<compile_context>
chip_gen: v7x
topology: tpu7x:2x2x1
jax: 0.10.0
libtpu: 0.0.40
codegen_flags: <defaults>
</compile_context>

<pallas_src>
import functools

import jax
import jax.numpy as jnp
from jax.experimental import pallas as pl
from jax.experimental.pallas import tpu as pltpu


def _round_up(n, m):
    return ((n + m - 1) // m) * m


def _vmem_capacity_bytes():
    """Physical VMEM of this TPU generation (128 MiB v5e/v6e, 64 MiB v7x/TC)."""
    try:
        info = pltpu.get_tpu_info()
        cap = int(getattr(info, "vmem_capacity_bytes", 0))
        if cap > 0:
            return cap
    except Exception:
        pass
    return 64 * 1024 * 1024  # conservative default: v7x per-TensorCore VMEM


_VMEM_CAP = _vmem_capacity_bytes()
# Scoped-VMEM limit handed to Mosaic: half of physical (64 MiB on v5e/v6e,
# 32 MiB on v7x) leaves headroom for compiler internals.
_VMEM_LIMIT_BYTES = min(_VMEM_CAP // 2, 64 * 1024 * 1024)
# Tile footprint budget (incl. double-buffering + accumulator scratch).
_TILE_VMEM_BUDGET = (_VMEM_LIMIT_BYTES * 3) // 4
# Whole-operand footprint below this -> gridless single-shot kernel; anything
# bigger goes through the pipelined grid (DMA/compute overlap, megacore).
_SINGLE_SHOT_BYTES = 2 * 1024 * 1024
# Below this many MACs, XLA's fused dot beats pad+cast+pallas_call overhead.
_TINY_MAC_THRESHOLD = 64 * 1024


# ----------------------------------------------------------------------------
# Pallas kernels: the _forward hot path (x @ W + b)
# ----------------------------------------------------------------------------
def _linear_kernel_single(x_ref, w_ref, b_ref, o_ref):
    # Whole (padded) problem resident in VMEM, no grid: one MXU pass + f32 bias.
    acc = jnp.dot(x_ref[...], w_ref[...], preferred_element_type=jnp.float32)
    o_ref[...] = (acc + b_ref[...]).astype(o_ref.dtype)


def _linear_kernel_tiled(x_ref, w_ref, b_ref, o_ref, acc_ref):
    k = pl.program_id(2)

    @pl.when(k == 0)
    def _():
        acc_ref[...] = jnp.zeros_like(acc_ref)

    acc_ref[...] += jnp.dot(x_ref[...], w_ref[...],
                            preferred_element_type=jnp.float32)

    @pl.when(k == pl.num_programs(2) - 1)
    def _():
        o_ref[...] = (acc_ref[...] + b_ref[...]).astype(o_ref.dtype)


# ----------------------------------------------------------------------------
# Tile selection helpers
# ----------------------------------------------------------------------------
def _tiled_vmem_bytes(tm, tn, tk):
    """VMEM footprint of one tiled step incl. double-buffering + f32 acc."""
    return (2 * tm * tk * 2      # bf16 x tiles (double-buffered)
            + 2 * tk * tn * 2    # bf16 w tiles (double-buffered)
            + 2 * 1 * tn * 4     # f32 bias tiles
            + 2 * tm * tn * 4    # f32 output tiles
            + tm * tn * 4)       # f32 accumulator scratch


def _pick_tile(extent, candidates):
    """Candidate minimizing padded extent; ties prefer the larger tile."""
    best, best_key = None, None
    for c in candidates:
        key = (_round_up(extent, c), -c)
        if best_key is None or key < best_key:
            best, best_key = c, key
    return best


# ----------------------------------------------------------------------------
# Wrapper: pad / dispatch / pallas_call
# ----------------------------------------------------------------------------
def pallas_linear(x, w, b, *, logical_out, force_tiled=False,
                  out_dtype=jnp.float32):
    """x: (B, F_in) f32/bf16.  w: (Kp, Np) bf16, pre-padded to multiples of 128
    with Kp >= F_in.  b: (1, Np) f32, pre-padded.  Returns (B, logical_out)."""
    B, F_in = x.shape
    Kp, Np = w.shape

    # Tiny problems: XLA's fused dot is strictly faster than pad + launch.
    if (not force_tiled) and B * F_in * logical_out <= _TINY_MAC_THRESHOLD:
        acc = jnp.dot(x.astype(jnp.bfloat16), w[:F_in, :logical_out],
                      preferred_element_type=jnp.float32)
        return (acc + b[:, :logical_out]).astype(out_dtype)

    # ---- gridless single-shot path (small operand sets only) ----------------
    Bp = _round_up(B, 8)
    operand_bytes = 2 * Bp * Kp + 2 * Kp * Np + 4 * Np + 4 * Bp * Np
    if (not force_tiled) and operand_bytes <= _SINGLE_SHOT_BYTES:
        xp = x.astype(jnp.bfloat16)
        if (Bp, Kp) != (B, F_in):
            xp = jnp.pad(xp, ((0, Bp - B), (0, Kp - F_in)))
        out_p = pl.pallas_call(
            _linear_kernel_single,
            out_shape=jax.ShapeDtypeStruct((Bp, Np), out_dtype),
            in_specs=[pl.BlockSpec(memory_space=pltpu.MemorySpace.VMEM)] * 3,
            out_specs=pl.BlockSpec(memory_space=pltpu.MemorySpace.VMEM),
            compiler_params=pltpu.CompilerParams(
                vmem_limit_bytes=_VMEM_LIMIT_BYTES),
        )(xp, w, b)
        if (Bp, Np) != (B, logical_out):
            return out_p[:B, :logical_out]
        return out_p

    # ---- pipelined / tiled path ---------------------------------------------
    Bp = _round_up(B, 16)  # bf16 sublane-packing friendly row padding

    if Bp <= 64:
        # Weight-streaming bound: one M block, grid parallelism on N (feeds
        # both v7x TensorCores), K as deep as the VMEM budget allows.
        tm = Bp
        tn = _pick_tile(Np, (512, 256, 128))
        if Np >= 256 and Np // tn < 2:
            tn = max(128, (Np // 2) // 128 * 128)
        tk = 128
        for cand in (Kp, 4096, 2048, 1024, 512, 256, 128):
            cand = min(cand, Kp)
            if (cand % 128 == 0 and Kp % cand == 0
                    and _tiled_vmem_bytes(tm, tn, cand) <= _TILE_VMEM_BUDGET):
                tk = cand
                break
    else:
        tm = _pick_tile(Bp, (512, 256, 128))
        tn = _pick_tile(Np, (512, 256, 128))
        k_cands = [c for c in (2048, 1024, 512, 384, 256, 128)
                   if _tiled_vmem_bytes(tm, tn, c) <= _TILE_VMEM_BUDGET]
        tk = _pick_tile(Kp, k_cands or (128,))

    Bp = _round_up(Bp, tm)
    Kt = _round_up(Kp, tk)
    Nt = _round_up(Np, tn)

    xp = jnp.pad(x.astype(jnp.bfloat16), ((0, Bp - B), (0, Kt - F_in)))
    wp = w if (Kt, Nt) == (Kp, Np) else jnp.pad(w, ((0, Kt - Kp), (0, Nt - Np)))
    bp = b if Nt == Np else jnp.pad(b, ((0, 0), (0, Nt - Np)))

    flops = 2 * Bp * Kt * Nt
    bytes_accessed = Bp * Kt * 2 + Kt * Nt * 2 + Bp * Nt * 4 + Nt * 4

    out_p = pl.pallas_call(
        _linear_kernel_tiled,
        out_shape=jax.ShapeDtypeStruct((Bp, Nt), out_dtype),
        grid_spec=pltpu.PrefetchScalarGridSpec(
            num_scalar_prefetch=0,
            grid=(Bp // tm, Nt // tn, Kt // tk),   # reduction axis last
            in_specs=[
                pl.BlockSpec((tm, tk), lambda i, j, k: (i, k)),
                # TODO(synk): on v5e (lowest HBM BW), pipeline_mode=pl.Buffered(3)
                # on this W spec can hide residual weight-DMA latency.
                pl.BlockSpec((tk, tn), lambda i, j, k: (k, j)),
                pl.BlockSpec((1, tn), lambda i, j, k: (0, j)),
            ],
            out_specs=pl.BlockSpec((tm, tn), lambda i, j, k: (i, j)),
            scratch_shapes=[pltpu.VMEM((tm, tn), jnp.float32)],
        ),
        compiler_params=pltpu.CompilerParams(
            dimension_semantics=("parallel", "parallel", "arbitrary"),
            vmem_limit_bytes=_VMEM_LIMIT_BYTES),
        cost_estimate=pl.CostEstimate(
            flops=flops, transcendentals=0, bytes_accessed=bytes_accessed),
    )(xp, wp, bp)

    if (Bp, Nt) != (B, logical_out):
        return out_p[:B, :logical_out]
    return out_p


# ----------------------------------------------------------------------------
# SubModule semantics (base-class dispatch / reshape glue, plain JAX)
# ----------------------------------------------------------------------------
class LinearSubModule:
    """Concrete realization of the abstract SubModule base class.

    _forward is the Pallas linear kernel; forward(dim=...) reproduces the
    base-class reshape dispatch and id-prefixing of internals.
    """

    def __init__(self, input_shape, id, out_features, key):
        self._input_shape = tuple(int(d) for d in input_shape)
        self._id = id
        in_features = 1
        for d in self._input_shape:
            in_features *= d
        self._in_features = in_features
        self._out_features = int(out_features)

        k_w, k_b = jax.random.split(key)
        # Deterministic synthetic init (no checkpoint load).
        w = jax.random.normal(k_w, (in_features, self._out_features),
                              dtype=jnp.float32) * 0.02
        b = jax.random.normal(k_b, (1, self._out_features),
                              dtype=jnp.float32) * 0.02
        self.weight = w   # logical f32 parameters (reference / export view)
        self.bias = b

        # Pre-cast to bf16 (MXU-native) and pre-pad to lane multiples ONCE so
        # there is no per-call pad/convert pass over the weight.
        Kp = _round_up(in_features, 128)
        Np = _round_up(self._out_features, 128)
        self._w_padded = jnp.pad(
            w.astype(jnp.bfloat16),
            ((0, Kp - in_features), (0, Np - self._out_features)))
        self._b_padded = jnp.pad(b, ((0, 0), (0, Np - self._out_features)))

        # jit fuses the per-call x pad/cast and the output slice with the
        # pallas_call; padded weights are passed as arguments (not re-padded).
        self._jit_linear = jax.jit(
            functools.partial(pallas_linear, logical_out=self._out_features))

    # --- from_args (spec classmethod) ----------------------------------------
    @classmethod
    def from_args(cls, args, input_shape, id):
        return cls(input_shape, id,
                   out_features=args["out_features"],
                   key=args.get("key", jax.random.PRNGKey(0)))

    # --- shape helpers (mirror _to_*d_shape) ----------------------------------
    @property
    def _output_shape(self):
        return (self._out_features,)

    def output_shape(self, dim=None):
        if dim is None:
            dim = len(self._output_shape)
        if dim == 1:
            return self._to_1d_shape()
        elif dim == 2:
            return self._to_2d_shape()
        elif dim == 3:
            return self._to_3d_shape()
        elif dim == 4:
            return self._to_4d_shape()
        raise ValueError('Invalid dim: {}'.format(dim))

    def _to_1d_shape(self):
        return (self._out_features,)

    def _to_2d_shape(self):
        return (1, self._out_features)

    def _to_3d_shape(self):
        return (self._out_features, 1)

    def _to_4d_shape(self):
        return (self._out_features, 1, 1)

    def _to_1d(self, submodule_output):
        b = submodule_output.shape[0]
        return submodule_output.reshape(b, *self._to_1d_shape())

    def _to_2d(self, submodule_output):
        b = submodule_output.shape[0]
        return submodule_output.reshape(b, *self._to_2d_shape())

    def _to_3d(self, submodule_output):
        b = submodule_output.shape[0]
        return submodule_output.reshape(b, *self._to_3d_shape())

    def _to_4d(self, submodule_output):
        b = submodule_output.shape[0]
        return submodule_output.reshape(b, *self._to_4d_shape())

    def to_dim(self, submodule_output, dim):
        if dim <= 0 or dim > 4:
            raise ValueError('Invalid dim: {}'.format(dim))
        elif dim == 1:
            return self._to_1d(submodule_output)
        elif dim == 2:
            return self._to_2d(submodule_output)
        elif dim == 3:
            return self._to_3d(submodule_output)
        elif dim == 4:
            return self._to_4d(submodule_output)

    # --- _forward hot path (Pallas) -------------------------------------------
    def _forward(self, x, internals=None, **kwargs):
        b = x.shape[0]
        x2d = x.reshape(b, -1)                     # flatten like torch .view
        out = self._jit_linear(x2d, self._w_padded, self._b_padded)
        # TODO(synk): base class leaves _new_internals abstract; this concrete
        # submodule is stateless, so internals is an empty dict.
        return out, {}

    def _new_internals(self):
        return {}

    def new_internals(self, device=None):
        return {self.id + k: (jax.device_put(v, device) if device is not None
                              else v)
                for k, v in self._new_internals().items()}

    def stacked_internals(self, key, internals):
        return jnp.stack(internals[self.id + key])

    # --- base-class forward dispatch ------------------------------------------
    def forward(self, *inputs, dim=None):
        submodule_output, internals = self._forward(*inputs)
        if dim is None:
            out = submodule_output
        elif dim == 1:
            out = self._to_1d(submodule_output)
        elif dim == 2:
            out = self._to_2d(submodule_output)
        elif dim == 3:
            out = self._to_3d(submodule_output)
        elif dim == 4:
            out = self._to_4d(submodule_output)
        else:
            raise ValueError('Invalid dim: {}'.format(dim))
        return out, self._id_internals(internals)

    def _id_internals(self, internals):
        return {self.id + k: v for k, v in internals.items()}

    @property
    def id(self):
        return self._id

    @property
    def input_shape(self):
        return self._input_shape


# ----------------------------------------------------------------------------
if __name__ == "__main__":
    key = jax.random.PRNGKey(0)
    k_x, k_params, k_big = jax.random.split(key, 3)

    # Small shapes consistent with the module: batch=2, input (4,16,16) ->
    # 1024 flattened features, 256 output features (single-shot Pallas path).
    B = 2
    input_shape = (4, 16, 16)
    out_features = 256

    mod = LinearSubModule(input_shape, id="sub0_", out_features=out_features,
                          key=k_params)
    x = jax.random.normal(k_x, (B,) + input_shape, dtype=jnp.float32)

    out_native, internals = mod.forward(x, dim=None)
    out_4d, _ = mod.forward(x, dim=4)
    jax.block_until_ready(out_native)
    jax.block_until_ready(out_4d)

    # Reference: same bf16-operand / f32-accumulate math in plain JAX.
    x2d = x.reshape(B, -1)
    ref = jnp.dot(x2d.astype(jnp.bfloat16), mod.weight.astype(jnp.bfloat16),
                  preferred_element_type=jnp.float32) + mod.bias
    assert out_native.shape == (B, out_features)
    assert out_4d.shape == (B, out_features, 1, 1)
    assert internals == {}
    assert jnp.allclose(out_native, ref, atol=1e-4, rtol=1e-4)
    assert jnp.allclose(out_4d.reshape(B, out_features), ref,
                        atol=1e-4, rtol=1e-4)
    assert mod.output_shape(4) == (out_features, 1, 1)

    # Exercise the pipelined/tiled path (grid over M, N, K; adaptive tiles).
    kx2, kw2, kb2 = jax.random.split(k_big, 3)
    B2, K2, N2 = 256, 1536, 640
    x2 = jax.random.normal(kx2, (B2, K2), dtype=jnp.float32)
    w2 = jax.random.normal(kw2, (K2, N2), dtype=jnp.float32) * 0.02
    b2 = jax.random.normal(kb2, (1, N2), dtype=jnp.float32) * 0.02
    out_t = pallas_linear(x2, w2.astype(jnp.bfloat16), b2,
                          logical_out=N2, force_tiled=True)
    jax.block_until_ready(out_t)
    ref_t = jnp.dot(x2.astype(jnp.bfloat16), w2.astype(jnp.bfloat16),
                    preferred_element_type=jnp.float32) + b2
    assert out_t.shape == (B2, N2)
    assert jnp.allclose(out_t, ref_t, atol=1e-3, rtol=1e-3)

    # Exercise the small-batch tiled branch (tm = Bp, N-parallel, deep K).
    kx3, kw3 = jax.random.split(jax.random.PRNGKey(3))
    B3, K3, N3 = 16, 2048, 512
    x3 = jax.random.normal(kx3, (B3, K3), dtype=jnp.float32)
    w3 = jax.random.normal(kw3, (K3, N3), dtype=jnp.float32) * 0.02
    b3 = jnp.zeros((1, N3), dtype=jnp.float32)
    out_s = pallas_linear(x3, w3.astype(jnp.bfloat16), b3,
                          logical_out=N3, force_tiled=True)
    jax.block_until_ready(out_s)
    ref_s = jnp.dot(x3.astype(jnp.bfloat16), w3.astype(jnp.bfloat16),
                    preferred_element_type=jnp.float32) + b3
    assert out_s.shape == (B3, N3)
    assert jnp.allclose(out_s, ref_s, atol=1e-3, rtol=1e-3)

    # Tiny fast path (pure XLA dot) stays numerically consistent.
    mod_tiny = LinearSubModule((4, 4, 2), id="tiny_", out_features=64,
                               key=jax.random.PRNGKey(4))
    x_tiny = jax.random.normal(jax.random.PRNGKey(5), (2, 4, 4, 2),
                               dtype=jnp.float32)
    out_tiny, _ = mod_tiny.forward(x_tiny, dim=2)
    jax.block_until_ready(out_tiny)
    ref_tiny = (jnp.dot(x_tiny.reshape(2, -1).astype(jnp.bfloat16),
                        mod_tiny.weight.astype(jnp.bfloat16),
                        preferred_element_type=jnp.float32) + mod_tiny.bias)
    assert out_tiny.shape == (2, 1, 64)
    assert jnp.allclose(out_tiny.reshape(2, 64), ref_tiny, atol=1e-5, rtol=1e-5)

    print("KERNEL_OK")
</pallas_src>

<mosaic_0001>
module attributes {stable_mosaic.version = 11 : i64} {
  func.func @_linear_kernel_single(%arg0: memref<8x1024xbf16, #tpu.memory_space<vmem>>, %arg1: memref<1024x256xbf16, #tpu.memory_space<vmem>>, %arg2: memref<1x256xf32, #tpu.memory_space<vmem>>, %arg3: memref<8x256xf32, #tpu.memory_space<vmem>>) attributes {dimension_semantics = [], scalar_prefetch = 0 : i64, scratch_operands = 0 : i64, tpu.core_type = #tpu.core_type<tc>} {
    %c0 = arith.constant 0 : index
    %c0_0 = arith.constant 0 : index
    %0 = vector.load %arg0[%c0, %c0_0] : memref<8x1024xbf16, #tpu.memory_space<vmem>>, vector<8x1024xbf16>
    %c0_1 = arith.constant 0 : index
    %c0_2 = arith.constant 0 : index
    %1 = vector.load %arg1[%c0_1, %c0_2] : memref<1024x256xbf16, #tpu.memory_space<vmem>>, vector<1024x256xbf16>
    %cst = arith.constant dense<0.000000e+00> : vector<8x256xf32>
    %2 = tpu.matmul %0, %1, %cst {dimension_numbers = #tpu.dot_dimension_numbers<[1], [0], [0], [1], [0, 0, 1, 1], [], []>} : vector<8x1024xbf16>, vector<1024x256xbf16>, vector<8x256xf32> -> vector<8x256xf32>
    %c0_3 = arith.constant 0 : index
    %c0_4 = arith.constant 0 : index
    %3 = vector.load %arg2[%c0_3, %c0_4] : memref<1x256xf32, #tpu.memory_space<vmem>>, vector<1x256xf32>
    %4 = vector.broadcast %3 : vector<1x256xf32> to vector<8x256xf32>
    %5 = arith.addf %2, %4 : vector<8x256xf32>
    %c0_5 = arith.constant 0 : index
    %c0_6 = arith.constant 0 : index
    %6 = vector.load %arg3[%c0_5, %c0_6] : memref<8x256xf32, #tpu.memory_space<vmem>>, vector<8x256xf32>
    tpu.vector_store %arg3[%c0_5, %c0_6], %5 {strides = array<i32>} : memref<8x256xf32, #tpu.memory_space<vmem>>, vector<8x256xf32>,
    return
  }
}

</mosaic_0001>

<llo_original>
// kernel: pallas_linear.1
$region0: #{pallas_linear.1}
  #allocation0 [shape = 'u32[]', space=smem, size = 0x4, offset = 0x4, fixed_abs, tag = 'smem constant byte address 0x4 - core index']
  #allocation1 [shape = 'u32[144,128]{1,0:T(1,128)}', space=vmem, size = 0x12000, scoped, tag = 'internal scratch']
  %s0 = inlined_call_operand.vmem [shape: bf16[8,1024], index: 0, kind: input, shape index: {}]
  %s1 = inlined_call_operand.hbm [shape: bf16[1024,256], index: 1, kind: input, shape index: {}]
  %s2 = inlined_call_operand.vmem [shape: f32[1,256], index: 2, kind: input, shape index: {}]
  %s3 = inlined_call_operand.vmem [shape: f32[8,256], index: 3, kind: output, shape index: {}]
  %s4 = sld [smem:[#allocation0]]
  $region26: #{pallas_linear.1} parent=0
    _
  %s6 = ssub.s32 1, %s4
  %s7 = scalar_select 0, %s6, %s4
  $region1: #{pallas_linear.1} parent=0
    #allocation2 [shape = 'u8[524288]{0}', space=vmem, size = 0x80000, scoped, tag = 'input window, operand 1, single buffered']
    #allocation3 [shape = 's32[1]{0}', space=sflag, size = 0x4, scoped, tag = 'scoped memory for pallas_linear.1']
    %8 = vsyncpa [#allocation3], 0
    // Predicated region
    $region2: #{pallas_linear.1} parent=1 // pred_check
      _
    $region3: #{pallas_linear.1} parent=1 // pred_check_branch
      %10 = sbr.rel (0) target = $region5
    $region4: #{pallas_linear.1} parent=1 // pred_region
      _
    $region5: #{pallas_linear.1} parent=1 // pred_fallthru
      _
    // Predicated region
    $region6: #{pallas_linear.1} parent=1 // pred_check
      _
    $region7: #{pallas_linear.1} parent=1 // pred_check_branch
      %12 = sbr.rel (0) target = $region9
    $region8: #{pallas_linear.1} parent=1 // pred_region
      %s14 = ssub.s32 16384, 16384
      %15 = vsyncadd [#allocation3], %s14
      %s16 = sshll.u32 [#allocation2], 4
      %s17 = int_to_ptr.vmem [resolvable:$true] %s16
      %22 = dma.hbm_to_vmem [thread:$0]  %s1, 16384, %s17, [#allocation3], 128, 128, 8
    $region9: #{pallas_linear.1} parent=1 // pred_fallthru
      _
    // Predicated region
    $region10: #{pallas_linear.1} parent=1 // pred_check
      _
    $region11: #{pallas_linear.1} parent=1 // pred_check_branch
      %24 = sbr.rel (0) target = $region13
    $region12: #{pallas_linear.1} parent=1 // pred_region
      _
    $region13: #{pallas_linear.1} parent=1 // pred_fallthru
      _
    // Predicated region
    $region14: #{pallas_linear.1} parent=1 // pred_check
      _
    $region15: #{pallas_linear.1} parent=1 // pred_check_branch
      %26 = sbr.rel (0) target = $region17
    $region16: #{pallas_linear.1} parent=1 // pred_region
      %27 = dma.done [#allocation3], 16384
    $region17: #{pallas_linear.1} parent=1 // pred_fallthru
      _
    %v28 = vld [vmem:[%s0] sm:$0xff]
    %v29 = vld [vmem:[%s0 + $0x8] sm:$0xff]
    %v30 = vld [vmem:[%s0 + $0x10] sm:$0xff]
    %v31 = vld [vmem:[%s0 + $0x18] sm:$0xff]
    %v32 = vld [vmem:[#allocation2] sm:$0xff]
    %v33 = vld [vmem:[#allocation2 + $0x8] sm:$0xff]
    %v34 = vld [vmem:[#allocation2 + $0x10] sm:$0xff]
    %v35 = vld [vmem:[#allocation2 + $0x18] sm:$0xff]
    %v36 = vld [vmem:[#allocation2 + $0x20] sm:$0xff]
    %v37 = vld [vmem:[#allocation2 + $0x28] sm:$0xff]
    %v38 = vld [vmem:[#allocation2 + $0x30] sm:$0xff]
    %v39 = vld [vmem:[#allocation2 + $0x38] sm:$0xff]
    %v40 = vld [vmem:[#allocation2 + $0x40] sm:$0xff]
    %v41 = vld [vmem:[#allocation2 + $0x48] sm:$0xff]
    %v42 = vld [vmem:[#allocation2 + $0x50] sm:$0xff]
    %v43 = vld [vmem:[#allocation2 + $0x58] sm:$0xff]
    %v44 = vld [vmem:[#allocation2 + $0x60] sm:$0xff]
    %v45 = vld [vmem:[#allocation2 + $0x68] sm:$0xff]
    %v46 = vld [vmem:[#allocation2 + $0x70] sm:$0xff]
    %v47 = vld [vmem:[#allocation2 + $0x78] sm:$0xff]
    %v48 = vld [vmem:[#allocation2 + $0x80] sm:$0xff]
    %v49 = vld [vmem:[#allocation2 + $0x88] sm:$0xff]
    %v50 = vld [vmem:[#allocation2 + $0x90] sm:$0xff]
    %v51 = vld [vmem:[#allocation2 + $0x98] sm:$0xff]
    %v52 = vld [vmem:[#allocation2 + $0xa0] sm:$0xff]
    %v53 = vld [vmem:[#allocation2 + $0xa8] sm:$0xff]
    %v54 = vld [vmem:[#allocation2 + $0xb0] sm:$0xff]
    %v55 = vld [vmem:[#allocation2 + $0xb8] sm:$0xff]
    %v56 = vld [vmem:[#allocation2 + $0xc0] sm:$0xff]
    %v57 = vld [vmem:[#allocation2 + $0xc8] sm:$0xff]
    %v58 = vld [vmem:[#allocation2 + $0xd0] sm:$0xff]
    %v59 = vld [vmem:[#allocation2 + $0xd8] sm:$0xff]
    %v60 = vld [vmem:[#allocation2 + $0xe0] sm:$0xff]
    %v61 = vld [vmem:[#allocation2 + $0xe8] sm:$0xff]
    %v62 = vld [vmem:[#allocation2 + $0xf0] sm:$0xff]
    %v63 = vld [vmem:[#allocation2 + $0xf8] sm:$0xff]
    %v64 = vld [vmem:[#allocation2 + $0x100] sm:$0xff]
    %v65 = vld [vmem:[#allocation2 + $0x108] sm:$0xff]
    %v66 = vld [vmem:[#allocation2 + $0x110] sm:$0xff]
    %v67 = vld [vmem:[#allocation2 + $0x118] sm:$0xff]
    %v68 = vld [vmem:[#allocation2 + $0x120] sm:$0xff]
    %v69 = vld [vmem:[#allocation2 + $0x128] sm:$0xff]
    %v70 = vld [vmem:[#allocation2 + $0x130] sm:$0xff]
    %v71 = vld [vmem:[#allocation2 + $0x138] sm:$0xff]
    %v72 = vld [vmem:[#allocation2 + $0x140] sm:$0xff]
    %v73 = vld [vmem:[#allocation2 + $0x148] sm:$0xff]
    %v74 = vld [vmem:[#allocation2 + $0x150] sm:$0xff]
    %v75 = vld [vmem:[#allocation2 + $0x158] sm:$0xff]
    %v76 = vld [vmem:[#allocation2 + $0x160] sm:$0xff]
    %v77 = vld [vmem:[#allocation2 + $0x168] sm:$0xff]
    %v78 = vld [vmem:[#allocation2 + $0x170] sm:$0xff]
    %v79 = vld [vmem:[#allocation2 + $0x178] sm:$0xff]
    %v80 = vld [vmem:[#allocation2 + $0x180] sm:$0xff]
    %v81 = vld [vmem:[#allocation2 + $0x188] sm:$0xff]
    %v82 = vld [vmem:[#allocation2 + $0x190] sm:$0xff]
    %v83 = vld [vmem:[#allocation2 + $0x198] sm:$0xff]
    %v84 = vld [vmem:[#allocation2 + $0x1a0] sm:$0xff]
    %v85 = vld [vmem:[#allocation2 + $0x1a8] sm:$0xff]
    %v86 = vld [vmem:[#allocation2 + $0x1b0] sm:$0xff]
    %v87 = vld [vmem:[#allocation2 + $0x1b8] sm:$0xff]
    %v88 = vld [vmem:[#allocation2 + $0x1c0] sm:$0xff]
    %v89 = vld [vmem:[#allocation2 + $0x1c8] sm:$0xff]
    %v90 = vld [vmem:[#allocation2 + $0x1d0] sm:$0xff]
    %v91 = vld [vmem:[#allocation2 + $0x1d8] sm:$0xff]
    %v92 = vld [vmem:[#allocation2 + $0x1e0] sm:$0xff]
    %v93 = vld [vmem:[#allocation2 + $0x1e8] sm:$0xff]
    %v94 = vld [vmem:[#allocation2 + $0x1f0] sm:$0xff]
    %v95 = vld [vmem:[#allocation2 + $0x1f8] sm:$0xff]
    %v96 = vld [vmem:[#allocation2 + $0x200] sm:$0xff]
    %v97 = vld [vmem:[#allocation2 + $0x208] sm:$0xff]
    %v98 = vld [vmem:[#allocation2 + $0x210] sm:$0xff]
    %v99 = vld [vmem:[#allocation2 + $0x218] sm:$0xff]
    %v100 = vld [vmem:[#allocation2 + $0x220] sm:$0xff]
    %v101 = vld [vmem:[#allocation2 + $0x228] sm:$0xff]
    %v102 = vld [vmem:[#allocation2 + $0x230] sm:$0xff]
    %v103 = vld [vmem:[#allocation2 + $0x238] sm:$0xff]
    %v104 = vld [vmem:[#allocation2 + $0x240] sm:$0xff]
    %v105 = vld [vmem:[#allocation2 + $0x248] sm:$0xff]
    %v106 = vld [vmem:[#allocation2 + $0x250] sm:$0xff]
    %v107 = vld [vmem:[#allocation2 + $0x258] sm:$0xff]
    %v108 = vld [vmem:[#allocation2 + $0x260] sm:$0xff]
    %v109 = vld [vmem:[#allocation2 + $0x268] sm:$0xff]
    %v110 = vld [vmem:[#allocation2 + $0x270] sm:$0xff]
    %v111 = vld [vmem:[#allocation2 + $0x278] sm:$0xff]
    %v112 = vld [vmem:[#allocation2 + $0x280] sm:$0xff]
    %v113 = vld [vmem:[#allocation2 + $0x288] sm:$0xff]
    %v114 = vld [vmem:[#allocation2 + $0x290] sm:$0xff]
    %v115 = vld [vmem:[#allocation2 + $0x298] sm:$0xff]
    %v116 = vld [vmem:[#allocation2 + $0x2a0] sm:$0xff]
    %v117 = vld [vmem:[#allocation2 + $0x2a8] sm:$0xff]
    %v118 = vld [vmem:[#allocation2 + $0x2b0] sm:$0xff]
    %v119 = vld [vmem:[#allocation2 + $0x2b8] sm:$0xff]
    %v120 = vld [vmem:[#allocation2 + $0x2c0] sm:$0xff]
    %v121 = vld [vmem:[#allocation2 + $0x2c8] sm:$0xff]
    %v122 = vld [vmem:[#allocation2 + $0x2d0] sm:$0xff]
    %v123 = vld [vmem:[#allocation2 + $0x2d8] sm:$0xff]
    %v124 = vld [vmem:[#allocation2 + $0x2e0] sm:$0xff]
    %v125 = vld [vmem:[#allocation2 + $0x2e8] sm:$0xff]
    %v126 = vld [vmem:[#allocation2 + $0x2f0] sm:$0xff]
    %v127 = vld [vmem:[#allocation2 + $0x2f8] sm:$0xff]
    %v128 = vld [vmem:[#allocation2 + $0x300] sm:$0xff]
    %v129 = vld [vmem:[#allocation2 + $0x308] sm:$0xff]
    %v130 = vld [vmem:[#allocation2 + $0x310] sm:$0xff]
    %v131 = vld [vmem:[#allocation2 + $0x318] sm:$0xff]
    %v132 = vld [vmem:[#allocation2 + $0x320] sm:$0xff]
    %v133 = vld [vmem:[#allocation2 + $0x328] sm:$0xff]
    %v134 = vld [vmem:[#allocation2 + $0x330] sm:$0xff]
    %v135 = vld [vmem:[#allocation2 + $0x338] sm:$0xff]
    %v136 = vld [vmem:[#allocation2 + $0x340] sm:$0xff]
    %v137 = vld [vmem:[#allocation2 + $0x348] sm:$0xff]
    %v138 = vld [vmem:[#allocation2 + $0x350] sm:$0xff]
    %v139 = vld [vmem:[#allocation2 + $0x358] sm:$0xff]
    %v140 = vld [vmem:[#allocation2 + $0x360] sm:$0xff]
    %v141 = vld [vmem:[#allocation2 + $0x368] sm:$0xff]
    %v142 = vld [vmem:[#allocation2 + $0x370] sm:$0xff]
    %v143 = vld [vmem:[#allocation2 + $0x378] sm:$0xff]
    %v144 = vld [vmem:[#allocation2 + $0x380] sm:$0xff]
    %v145 = vld [vmem:[#allocation2 + $0x388] sm:$0xff]
    %v146 = vld [vmem:[#allocation2 + $0x390] sm:$0xff]
    %v147 = vld [vmem:[#allocation2 + $0x398] sm:$0xff]
    %v148 = vld [vmem:[#allocation2 + $0x3a0] sm:$0xff]
    %v149 = vld [vmem:[#allocation2 + $0x3a8] sm:$0xff]
    %v150 = vld [vmem:[#allocation2 + $0x3b0] sm:$0xff]
    %v151 = vld [vmem:[#allocation2 + $0x3b8] sm:$0xff]
    %v152 = vld [vmem:[#allocation2 + $0x3c0] sm:$0xff]
    %v153 = vld [vmem:[#allocation2 + $0x3c8] sm:$0xff]
    %v154 = vld [vmem:[#allocation2 + $0x3d0] sm:$0xff]
    %v155 = vld [vmem:[#allocation2 + $0x3d8] sm:$0xff]
    %v156 = vld [vmem:[#allocation2 + $0x3e0] sm:$0xff]
    %v157 = vld [vmem:[#allocation2 + $0x3e8] sm:$0xff]
    %v158 = vld [vmem:[#allocation2 + $0x3f0] sm:$0xff]
    %v159 = vld [vmem:[#allocation2 + $0x3f8] sm:$0xff]
    %v160 = vld [vmem:[%s2] sm:$0x3]
    %v162 = vlaneseq
    %v163 = vshrl.u32 %v162, 7
    %v164 = vsub.s32 0, %v163
    %v165 = vrot.slane %v160, %v164
    %v166 = vlaneseq
    %v167 = vshrl.u32 %v166, 7
    %v168 = vsub.s32 1, %v167
    %v169 = vrot.slane %v160, %v168
    %v176 = vunpack.c.l.b16 %v28
    %v177 = vunpack.c.h.b16 %v28
    %v178 = vunpack.c.l.b16 %v29
    %v179 = vunpack.c.h.b16 %v29
    %v180 = vunpack.c.l.b16 %v30
    %v181 = vunpack.c.h.b16 %v30
    %v182 = vunpack.c.l.b16 %v31
    %v183 = vunpack.c.h.b16 %v31
    %v184 = vpack.c.b16 %v176, %v176
    %v185 = vpack.c.b16 %v177, %v177
    %v186 = vpack.c.b16 %v178, %v178
    %v187 = vpack.c.b16 %v179, %v179
    %v188 = vpack.c.b16 %v180, %v180
    %v189 = vpack.c.b16 %v181, %v181
    %v190 = vpack.c.b16 %v182, %v182
    %v191 = vpack.c.b16 %v183, %v183
    %v328 = vunpack.c.l.b16 %v32
    %v329 = vunpack.c.h.b16 %v32
    %v330 = vunpack.c.l.b16 %v33
    %v331 = vunpack.c.h.b16 %v33
    %v332 = vunpack.c.l.b16 %v34
    %v333 = vunpack.c.h.b16 %v34
    %v334 = vunpack.c.l.b16 %v35
    %v335 = vunpack.c.h.b16 %v35
    %v336 = vunpack.c.l.b16 %v36
    %v337 = vunpack.c.h.b16 %v36
    %v338 = vunpack.c.l.b16 %v37
    %v339 = vunpack.c.h.b16 %v37
    %v340 = vunpack.c.l.b16 %v38
    %v341 = vunpack.c.h.b16 %v38
    %v342 = vunpack.c.l.b16 %v39
    %v343 = vunpack.c.h.b16 %v39
    %v344 = vunpack.c.l.b16 %v40
    %v345 = vunpack.c.h.b16 %v40
    %v346 = vunpack.c.l.b16 %v41
    %v347 = vunpack.c.h.b16 %v41
    %v348 = vunpack.c.l.b16 %v42
    %v349 = vunpack.c.h.b16 %v42
    %v350 = vunpack.c.l.b16 %v43
    %v351 = vunpack.c.h.b16 %v43
    %v352 = vunpack.c.l.b16 %v44
    %v353 = vunpack.c.h.b16 %v44
    %v354 = vunpack.c.l.b16 %v45
    %v355 = vunpack.c.h.b16 %v45
    %v356 = vunpack.c.l.b16 %v46
    %v357 = vunpack.c.h.b16 %v46
    %v358 = vunpack.c.l.b16 %v47
    %v359 = vunpack.c.h.b16 %v47
    %v360 = vunpack.c.l.b16 %v48
    %v361 = vunpack.c.h.b16 %v48
    %v362 = vunpack.c.l.b16 %v49
    %v363 = vunpack.c.h.b16 %v49
    %v364 = vunpack.c.l.b16 %v50
    %v365 = vunpack.c.h.b16 %v50
    %v366 = vunpack.c.l.b16 %v51
    %v367 = vunpack.c.h.b16 %v51
    %v368 = vunpack.c.l.b16 %v52
    %v369 = vunpack.c.h.b16 %v52
    %v370 = vunpack.c.l.b16 %v53
    %v371 = vunpack.c.h.b16 %v53
    %v372 = vunpack.c.l.b16 %v54
    %v373 = vunpack.c.h.b16 %v54
    %v374 = vunpack.c.l.b16 %v55
    %v375 = vunpack.c.h.b16 %v55
    %v376 = vunpack.c.l.b16 %v56
    %v377 = vunpack.c.h.b16 %v56
    %v378 = vunpack.c.l.b16 %v57
    %v379 = vunpack.c.h.b16 %v57
    %v380 = vunpack.c.l.b16 %v58
    %v381 = vunpack.c.h.b16 %v58
    %v382 = vunpack.c.l.b16 %v59
    %v383 = vunpack.c.h.b16 %v59
    %v384 = vunpack.c.l.b16 %v60
    %v385 = vunpack.c.h.b16 %v60
    %v386 = vunpack.c.l.b16 %v61
    %v387 = vunpack.c.h.b16 %v61
    %v388 = vunpack.c.l.b16 %v62
    %v389 = vunpack.c.h.b16 %v62
    %v390 = vunpack.c.l.b16 %v63
    %v391 = vunpack.c.h.b16 %v63
    %v392 = vunpack.c.l.b16 %v64
    %v393 = vunpack.c.h.b16 %v64
    %v394 = vunpack.c.l.b16 %v65
    %v395 = vunpack.c.h.b16 %v65
    %v396 = vunpack.c.l.b16 %v66
    %v397 = vunpack.c.h.b16 %v66
    %v398 = vunpack.c.l.b16 %v67
    %v399 = vunpack.c.h.b16 %v67
    %v400 = vunpack.c.l.b16 %v68
    %v401 = vunpack.c.h.b16 %v68
    %v402 = vunpack.c.l.b16 %v69
    %v403 = vunpack.c.h.b16 %v69
    %v404 = vunpack.c.l.b16 %v70
    %v405 = vunpack.c.h.b16 %v70
    %v406 = vunpack.c.l.b16 %v71
    %v407 = vunpack.c.h.b16 %v71
    %v408 = vunpack.c.l.b16 %v72
    %v409 = vunpack.c.h.b16 %v72
    %v410 = vunpack.c.l.b16 %v73
    %v411 = vunpack.c.h.b16 %v73
    %v412 = vunpack.c.l.b16 %v74
    %v413 = vunpack.c.h.b16 %v74
    %v414 = vunpack.c.l.b16 %v75
    %v415 = vunpack.c.h.b16 %v75
    %v416 = vunpack.c.l.b16 %v76
    %v417 = vunpack.c.h.b16 %v76
    %v418 = vunpack.c.l.b16 %v77
    %v419 = vunpack.c.h.b16 %v77
    %v420 = vunpack.c.l.b16 %v78
    %v421 = vunpack.c.h.b16 %v78
    %v422 = vunpack.c.l.b16 %v79
    %v423 = vunpack.c.h.b16 %v79
    %v424 = vunpack.c.l.b16 %v80
    %v425 = vunpack.c.h.b16 %v80
    %v426 = vunpack.c.l.b16 %v81
    %v427 = vunpack.c.h.b16 %v81
    %v428 = vunpack.c.l.b16 %v82
    %v429 = vunpack.c.h.b16 %v82
    %v430 = vunpack.c.l.b16 %v83
    %v431 = vunpack.c.h.b16 %v83
    %v432 = vunpack.c.l.b16 %v84
    %v433 = vunpack.c.h.b16 %v84
    %v434 = vunpack.c.l.b16 %v85
    %v435 = vunpack.c.h.b16 %v85
    %v436 = vunpack.c.l.b16 %v86
    %v437 = vunpack.c.h.b16 %v86
    %v438 = vunpack.c.l.b16 %v87
    %v439 = vunpack.c.h.b16 %v87
    %v440 = vunpack.c.l.b16 %v88
    %v441 = vunpack.c.h.b16 %v88
    %v442 = vunpack.c.l.b16 %v89
    %v443 = vunpack.c.h.b16 %v89
    %v444 = vunpack.c.l.b16 %v90
    %v445 = vunpack.c.h.b16 %v90
    %v446 = vunpack.c.l.b16 %v91
    %v447 = vunpack.c.h.b16 %v91
    %v448 = vunpack.c.l.b16 %v92
    %v449 = vunpack.c.h.b16 %v92
    %v450 = vunpack.c.l.b16 %v93
    %v451 = vunpack.c.h.b16 %v93
    %v452 = vunpack.c.l.b16 %v94
    %v453 = vunpack.c.h.b16 %v94
    %v454 = vunpack.c.l.b16 %v95
    %v455 = vunpack.c.h.b16 %v95
    %v456 = vunpack.c.l.b16 %v96
    %v457 = vunpack.c.h.b16 %v96
    %v458 = vunpack.c.l.b16 %v97
    %v459 = vunpack.c.h.b16 %v97
    %v460 = vunpack.c.l.b16 %v98
    %v461 = vunpack.c.h.b16 %v98
    %v462 = vunpack.c.l.b16 %v99
    %v463 = vunpack.c.h.b16 %v99
    %v464 = vunpack.c.l.b16 %v100
    %v465 = vunpack.c.h.b16 %v100
    %v466 = vunpack.c.l.b16 %v101
    %v467 = vunpack.c.h.b16 %v101
    %v468 = vunpack.c.l.b16 %v102
    %v469 = vunpack.c.h.b16 %v102
    %v470 = vunpack.c.l.b16 %v103
    %v471 = vunpack.c.h.b16 %v103
    %v472 = vunpack.c.l.b16 %v104
    %v473 = vunpack.c.h.b16 %v104
    %v474 = vunpack.c.l.b16 %v105
    %v475 = vunpack.c.h.b16 %v105
    %v476 = vunpack.c.l.b16 %v106
    %v477 = vunpack.c.h.b16 %v106
    %v478 = vunpack.c.l.b16 %v107
    %v479 = vunpack.c.h.b16 %v107
    %v480 = vunpack.c.l.b16 %v108
    %v481 = vunpack.c.h.b16 %v108
    %v482 = vunpack.c.l.b16 %v109
    %v483 = vunpack.c.h.b16 %v109
    %v484 = vunpack.c.l.b16 %v110
    %v485 = vunpack.c.h.b16 %v110
    %v486 = vunpack.c.l.b16 %v111
    %v487 = vunpack.c.h.b16 %v111
    %v488 = vunpack.c.l.b16 %v112
    %v489 = vunpack.c.h.b16 %v112
    %v490 = vunpack.c.l.b16 %v113
    %v491 = vunpack.c.h.b16 %v113
    %v492 = vunpack.c.l.b16 %v114
    %v493 = vunpack.c.h.b16 %v114
    %v494 = vunpack.c.l.b16 %v115
    %v495 = vunpack.c.h.b16 %v115
    %v496 = vunpack.c.l.b16 %v116
    %v497 = vunpack.c.h.b16 %v116
    %v498 = vunpack.c.l.b16 %v117
    %v499 = vunpack.c.h.b16 %v117
    %v500 = vunpack.c.l.b16 %v118
    %v501 = vunpack.c.h.b16 %v118
    %v502 = vunpack.c.l.b16 %v119
    %v503 = vunpack.c.h.b16 %v119
    %v504 = vunpack.c.l.b16 %v120
    %v505 = vunpack.c.h.b16 %v120
    %v506 = vunpack.c.l.b16 %v121
    %v507 = vunpack.c.h.b16 %v121
    %v508 = vunpack.c.l.b16 %v122
    %v509 = vunpack.c.h.b16 %v122
    %v510 = vunpack.c.l.b16 %v123
    %v511 = vunpack.c.h.b16 %v123
    %v512 = vunpack.c.l.b16 %v124
    %v513 = vunpack.c.h.b16 %v124
    %v514 = vunpack.c.l.b16 %v125
    %v515 = vunpack.c.h.b16 %v125
    %v516 = vunpack.c.l.b16 %v126
    %v517 = vunpack.c.h.b16 %v126
    %v518 = vunpack.c.l.b16 %v127
    %v519 = vunpack.c.h.b16 %v127
    %v520 = vunpack.c.l.b16 %v128
    %v521 = vunpack.c.h.b16 %v128
    %v522 = vunpack.c.l.b16 %v129
    %v523 = vunpack.c.h.b16 %v129
    %v524 = vunpack.c.l.b16 %v130
    %v525 = vunpack.c.h.b16 %v130
    %v526 = vunpack.c.l.b16 %v131
    %v527 = vunpack.c.h.b16 %v131
    %v528 = vunpack.c.l.b16 %v132
    %v529 = vunpack.c.h.b16 %v132
    %v530 = vunpack.c.l.b16 %v133
    %v531 = vunpack.c.h.b16 %v133
    %v532 = vunpack.c.l.b16 %v134
    %v533 = vunpack.c.h.b16 %v134
    %v534 = vunpack.c.l.b16 %v135
    %v535 = vunpack.c.h.b16 %v135
    %v536 = vunpack.c.l.b16 %v136
    %v537 = vunpack.c.h.b16 %v136
    %v538 = vunpack.c.l.b16 %v137
    %v539 = vunpack.c.h.b16 %v137
    %v540 = vunpack.c.l.b16 %v138
    %v541 = vunpack.c.h.b16 %v138
    %v542 = vunpack.c.l.b16 %v139
    %v543 = vunpack.c.h.b16 %v139
    %v544 = vunpack.c.l.b16 %v140
    %v545 = vunpack.c.h.b16 %v140
    %v546 = vunpack.c.l.b16 %v141
    %v547 = vunpack.c.h.b16 %v141
    %v548 = vunpack.c.l.b16 %v142
    %v549 = vunpack.c.h.b16 %v142
    %v550 = vunpack.c.l.b16 %v143
    %v551 = vunpack.c.h.b16 %v143
    %v552 = vunpack.c.l.b16 %v144
    %v553 = vunpack.c.h.b16 %v144
    %v554 = vunpack.c.l.b16 %v145
    %v555 = vunpack.c.h.b16 %v145
    %v556 = vunpack.c.l.b16 %v146
    %v557 = vunpack.c.h.b16 %v146
    %v558 = vunpack.c.l.b16 %v147
    %v559 = vunpack.c.h.b16 %v147
    %v560 = vunpack.c.l.b16 %v148
    %v561 = vunpack.c.h.b16 %v148
    %v562 = vunpack.c.l.b16 %v149
    %v563 = vunpack.c.h.b16 %v149
    %v564 = vunpack.c.l.b16 %v150
    %v565 = vunpack.c.h.b16 %v150
    %v566 = vunpack.c.l.b16 %v151
    %v567 = vunpack.c.h.b16 %v151
    %v568 = vunpack.c.l.b16 %v152
    %v569 = vunpack.c.h.b16 %v152
    %v570 = vunpack.c.l.b16 %v153
    %v571 = vunpack.c.h.b16 %v153
    %v572 = vunpack.c.l.b16 %v154
    %v573 = vunpack.c.h.b16 %v154
    %v574 = vunpack.c.l.b16 %v155
    %v575 = vunpack.c.h.b16 %v155
    %v576 = vunpack.c.l.b16 %v156
    %v577 = vunpack.c.h.b16 %v156
    %v578 = vunpack.c.l.b16 %v157
    %v579 = vunpack.c.h.b16 %v157
    %v580 = vunpack.c.l.b16 %v158
    %v581 = vunpack.c.h.b16 %v158
    %v582 = vunpack.c.l.b16 %v159
    %v583 = vunpack.c.h.b16 %v159
    %v584 = vpack.c.b16 %v330, %v328
    %v585 = vpack.c.b16 %v331, %v329
    %v586 = vpack.c.b16 %v334, %v332
    %v587 = vpack.c.b16 %v335, %v333
    %v588 = vpack.c.b16 %v338, %v336
    %v589 = vpack.c.b16 %v339, %v337
    %v590 = vpack.c.b16 %v342, %v340
    %v591 = vpack.c.b16 %v343, %v341
    %v592 = vpack.c.b16 %v346, %v344
    %v593 = vpack.c.b16 %v347, %v345
    %v594 = vpack.c.b16 %v350, %v348
    %v595 = vpack.c.b16 %v351, %v349
    %v596 = vpack.c.b16 %v354, %v352
    %v597 = vpack.c.b16 %v355, %v353
    %v598 = vpack.c.b16 %v358, %v356
    %v599 = vpack.c.b16 %v359, %v357
    %v600 = vpack.c.b16 %v362, %v360
    %v601 = vpack.c.b16 %v363, %v361
    %v602 = vpack.c.b16 %v366, %v364
    %v603 = vpack.c.b16 %v367, %v365
    %v604 = vpack.c.b16 %v370, %v368
    %v605 = vpack.c.b16 %v371, %v369
    %v606 = vpack.c.b16 %v374, %v372
    %v607 = vpack.c.b16 %v375, %v373
    %v608 = vpack.c.b16 %v378, %v376
    %v609 = vpack.c.b16 %v379, %v377
    %v610 = vpack.c.b16 %v382, %v380
    %v611 = vpack.c.b16 %v383, %v381
    %v612 = vpack.c.b16 %v386, %v384
    %v613 = vpack.c.b16 %v387, %v385
    %v614 = vpack.c.b16 %v390, %v388
    %v615 = vpack.c.b16 %v391, %v389
    %v616 = vpack.c.b16 %v394, %v392
    %v617 = vpack.c.b16 %v395, %v393
    %v618 = vpack.c.b16 %v398, %v396
    %v619 = vpack.c.b16 %v399, %v397
    %v620 = vpack.c.b16 %v402, %v400
    %v621 = vpack.c.b16 %v403, %v401
    %v622 = vpack.c.b16 %v406, %v404
    %v623 = vpack.c.b16 %v407, %v405
    %v624 = vpack.c.b16 %v410, %v408
    %v625 = vpack.c.b16 %v411, %v409
    %v626 = vpack.c.b16 %v414, %v412
    %v627 = vpack.c.b16 %v415, %v413
    %v628 = vpack.c.b16 %v418, %v416
    %v629 = vpack.c.b16 %v419, %v417
    %v630 = vpack.c.b16 %v422, %v420
    %v631 = vpack.c.b16 %v423, %v421
    %v632 = vpack.c.b16 %v426, %v424
    %v633 = vpack.c.b16 %v427, %v425
    %v634 = vpack.c.b16 %v430, %v428
    %v635 = vpack.c.b16 %v431, %v429
    %v636 = vpack.c.b16 %v434, %v432
    %v637 = vpack.c.b16 %v435, %v433
    %v638 = vpack.c.b16 %v438, %v436
    %v639 = vpack.c.b16 %v439, %v437
    %v640 = vpack.c.b16 %v442, %v440
    %v641 = vpack.c.b16 %v443, %v441
    %v642 = vpack.c.b16 %v446, %v444
    %v643 = vpack.c.b16 %v447, %v445
    %v644 = vpack.c.b16 %v450, %v448
    %v645 = vpack.c.b16 %v451, %v449
    %v646 = vpack.c.b16 %v454, %v452
    %v647 = vpack.c.b16 %v455, %v453
    %v648 = vpack.c.b16 %v458, %v456
    %v649 = vpack.c.b16 %v459, %v457
    %v650 = vpack.c.b16 %v462, %v460
    %v651 = vpack.c.b16 %v463, %v461
    %v652 = vpack.c.b16 %v466, %v464
    %v653 = vpack.c.b16 %v467, %v465
    %v654 = vpack.c.b16 %v470, %v468
    %v655 = vpack.c.b16 %v471, %v469
    %v656 = vpack.c.b16 %v474, %v472
    %v657 = vpack.c.b16 %v475, %v473
    %v658 = vpack.c.b16 %v478, %v476
    %v659 = vpack.c.b16 %v479, %v477
    %v660 = vpack.c.b16 %v482, %v480
    %v661 = vpack.c.b16 %v483, %v481
    %v662 = vpack.c.b16 %v486, %v484
    %v663 = vpack.c.b16 %v487, %v485
    %v664 = vpack.c.b16 %v490, %v488
    %v665 = vpack.c.b16 %v491, %v489
    %v666 = vpack.c.b16 %v494, %v492
    %v667 = vpack.c.b16 %v495, %v493
    %v668 = vpack.c.b16 %v498, %v496
    %v669 = vpack.c.b16 %v499, %v497
    %v670 = vpack.c.b16 %v502, %v500
    %v671 = vpack.c.b16 %v503, %v501
    %v672 = vpack.c.b16 %v506, %v504
    %v673 = vpack.c.b16 %v507, %v505
    %v674 = vpack.c.b16 %v510, %v508
    %v675 = vpack.c.b16 %v511, %v509
    %v676 = vpack.c.b16 %v514, %v512
    %v677 = vpack.c.b16 %v515, %v513
    %v678 = vpack.c.b16 %v518, %v516
    %v679 = vpack.c.b16 %v519, %v517
    %v680 = vpack.c.b16 %v522, %v520
    %v681 = vpack.c.b16 %v523, %v521
    %v682 = vpack.c.b16 %v526, %v524
    %v683 = vpack.c.b16 %v527, %v525
    %v684 = vpack.c.b16 %v530, %v528
    %v685 = vpack.c.b16 %v531, %v529
    %v686 = vpack.c.b16 %v534, %v532
    %v687 = vpack.c.b16 %v535, %v533
    %v688 = vpack.c.b16 %v538, %v536
    %v689 = vpack.c.b16 %v539, %v537
    %v690 = vpack.c.b16 %v542, %v540
    %v691 = vpack.c.b16 %v543, %v541
    %v692 = vpack.c.b16 %v546, %v544
    %v693 = vpack.c.b16 %v547, %v545
    %v694 = vpack.c.b16 %v550, %v548
    %v695 = vpack.c.b16 %v551, %v549
    %v696 = vpack.c.b16 %v554, %v552
    %v697 = vpack.c.b16 %v555, %v553
    %v698 = vpack.c.b16 %v558, %v556
    %v699 = vpack.c.b16 %v559, %v557
    %v700 = vpack.c.b16 %v562, %v560
    %v701 = vpack.c.b16 %v563, %v561
    %v702 = vpack.c.b16 %v566, %v564
    %v703 = vpack.c.b16 %v567, %v565
    %v704 = vpack.c.b16 %v570, %v568
    %v705 = vpack.c.b16 %v571, %v569
    %v706 = vpack.c.b16 %v574, %v572
    %v707 = vpack.c.b16 %v575, %v573
    %v708 = vpack.c.b16 %v578, %v576
    %v709 = vpack.c.b16 %v579, %v577
    %v710 = vpack.c.b16 %v582, %v580
    %v711 = vpack.c.b16 %v583, %v581
    %840 = vmatprep.subr.bf16.mxu0 %v585
    %841 = vmatpush1.bf16.msra.mxu0 %v584
    %842 = vmatprep.subr.bf16.mxu0 %v587
    %843 = vmatpush1.bf16.msra.mxu0 %v586
    %844 = vmatprep.subr.bf16.mxu0 %v589
    %845 = vmatpush1.bf16.msra.mxu0 %v588
    %846 = vmatprep.subr.bf16.mxu0 %v591
    %847 = vmatpush1.bf16.msra.mxu0 %v590
    %848 = vmatprep.subr.bf16.mxu0 %v593
    %849 = vmatpush1.bf16.msra.mxu0 %v592
    %850 = vmatprep.subr.bf16.mxu0 %v595
    %851 = vmatpush1.bf16.msra.mxu0 %v594
    %852 = vmatprep.subr.bf16.mxu0 %v597
    %853 = vmatpush1.bf16.msra.mxu0 %v596
    %854 = vmatprep.subr.bf16.mxu0 %v599
    %855 = vmatpush1.bf16.msra.mxu0 %v598
    %856 = vmatprep.subr.bf16.mxu0 %v601
    %857 = vmatpush1.bf16.msra.mxu0 %v600
    %858 = vmatprep.subr.bf16.mxu0 %v603
    %859 = vmatpush1.bf16.msra.mxu0 %v602
    %860 = vmatprep.subr.bf16.mxu0 %v605
    %861 = vmatpush1.bf16.msra.mxu0 %v604
    %862 = vmatprep.subr.bf16.mxu0 %v607
    %863 = vmatpush1.bf16.msra.mxu0 %v606
    %864 = vmatprep.subr.bf16.mxu0 %v609
    %865 = vmatpush1.bf16.msra.mxu0 %v608
    %866 = vmatprep.subr.bf16.mxu0 %v611
    %867 = vmatpush1.bf16.msra.mxu0 %v610
    %868 = vmatprep.subr.bf16.mxu0 %v613
    %869 = vmatpush1.bf16.msra.mxu0 %v612
    %870 = vmatprep.subr.bf16.mxu0 %v615
    %871 = vmatpush1.bf16.msra.mxu0 %v614
    %872 = vmatprep.mubr.bf16.mxu0 %v185
    %873 = vmatmul.mubr.bf16.gmra.mrb[0].mxu0 %v184
    %v874 = vpop.f32.mrb[0].mxu0
    %v875 = vadd.f32 %v165, %v874
    %v876 = vpop.f32.mrb[0].mxu0
    %v877 = vadd.f32 %v169, %v876
    %v878 = vpop.f32.mrb[0].mxu0
    %v879 = vpop.f32.mrb[0].mxu0
    %880 = vdwg.mxu0
    %881 = vmatprep.subr.bf16.mxu0 %v617
    %882 = vmatpush1.bf16.msra.mxu0 %v616
    %883 = vmatprep.subr.bf16.mxu0 %v619
    %884 = vmatpush1.bf16.msra.mxu0 %v618
    %885 = vmatprep.subr.bf16.mxu0 %v621
    %886 = vmatpush1.bf16.msra.mxu0 %v620
    %887 = vmatprep.subr.bf16.mxu0 %v623
    %888 = vmatpush1.bf16.msra.mxu0 %v622
    %889 = vmatprep.subr.bf16.mxu0 %v625
    %890 = vmatpush1.bf16.msra.mxu0 %v624
    %891 = vmatprep.subr.bf16.mxu0 %v627
    %892 = vmatpush1.bf16.msra.mxu0 %v626
    %893 = vmatprep.subr.bf16.mxu0 %v629
    %894 = vmatpush1.bf16.msra.mxu0 %v628
    %895 = vmatprep.subr.bf16.mxu0 %v631
    %896 = vmatpush1.bf16.msra.mxu0 %v630
    %897 = vmatprep.subr.bf16.mxu0 %v633
    %898 = vmatpush1.bf16.msra.mxu0 %v632
    %899 = vmatprep.subr.bf16.mxu0 %v635
    %900 = vmatpush1.bf16.msra.mxu0 %v634
    %901 = vmatprep.subr.bf16.mxu0 %v637
    %902 = vmatpush1.bf16.msra.mxu0 %v636
    %903 = vmatprep.subr.bf16.mxu0 %v639
    %904 = vmatpush1.bf16.msra.mxu0 %v638
    %905 = vmatprep.subr.bf16.mxu0 %v641
    %906 = vmatpush1.bf16.msra.mxu0 %v640
    %907 = vmatprep.subr.bf16.mxu0 %v643
    %908 = vmatpush1.bf16.msra.mxu0 %v642
    %909 = vmatprep.subr.bf16.mxu0 %v645
    %910 = vmatpush1.bf16.msra.mxu0 %v644
    %911 = vmatprep.subr.bf16.mxu0 %v647
    %912 = vmatpush1.bf16.msra.mxu0 %v646
    %913 = vmatprep.mubr.bf16.mxu0 %v187
    %914 = vmatmul.mubr.bf16.gmra.mrb[0].mxu0 %v186
    %v915 = vpop.f32.mrb[0].mxu0
    %v916 = vadd.f32 %v875, %v915
    %v917 = vpop.f32.mrb[0].mxu0
    %v918 = vadd.f32 %v877, %v917
    %v919 = vpop.f32.mrb[0].mxu0
    %v920 = vpop.f32.mrb[0].mxu0
    %921 = vdwg.mxu0
    %922 = vmatprep.subr.bf16.mxu0 %v649
    %923 = vmatpush1.bf16.msra.mxu0 %v648
    %924 = vmatprep.subr.bf16.mxu0 %v651
    %925 = vmatpush1.bf16.msra.mxu0 %v650
    %926 = vmatprep.subr.bf16.mxu0 %v653
    %927 = vmatpush1.bf16.msra.mxu0 %v652
    %928 = vmatprep.subr.bf16.mxu0 %v655
    %929 = vmatpush1.bf16.msra.mxu0 %v654
    %930 = vmatprep.subr.bf16.mxu0 %v657
    %931 = vmatpush1.bf16.msra.mxu0 %v656
    %932 = vmatprep.subr.bf16.mxu0 %v659
    %933 = vmatpush1.bf16.msra.mxu0 %v658
    %934 = vmatprep.subr.bf16.mxu0 %v661
    %935 = vmatpush1.bf16.msra.mxu0 %v660
    %936 = vmatprep.subr.bf16.mxu0 %v663
    %937 = vmatpush1.bf16.msra.mxu0 %v662
    %938 = vmatprep.subr.bf16.mxu0 %v665
    %939 = vmatpush1.bf16.msra.mxu0 %v664
    %940 = vmatprep.subr.bf16.mxu0 %v667
    %941 = vmatpush1.bf16.msra.mxu0 %v666
    %942 = vmatprep.subr.bf16.mxu0 %v669
    %943 = vmatpush1.bf16.msra.mxu0 %v668
    %944 = vmatprep.subr.bf16.mxu0 %v671
    %945 = vmatpush1.bf16.msra.mxu0 %v670
    %946 = vmatprep.subr.bf16.mxu0 %v673
    %947 = vmatpush1.bf16.msra.mxu0 %v672
    %948 = vmatprep.subr.bf16.mxu0 %v675
    %949 = vmatpush1.bf16.msra.mxu0 %v674
    %950 = vmatprep.subr.bf16.mxu0 %v677
    %951 = vmatpush1.bf16.msra.mxu0 %v676
    %952 = vmatprep.subr.bf16.mxu0 %v679
    %953 = vmatpush1.bf16.msra.mxu0 %v678
    %954 = vmatprep.mubr.bf16.mxu0 %v189
    %955 = vmatmul.mubr.bf16.gmra.mrb[0].mxu0 %v188
    %v956 = vpop.f32.mrb[0].mxu0
    %v957 = vadd.f32 %v916, %v956
    %v958 = vpop.f32.mrb[0].mxu0
    %v959 = vadd.f32 %v918, %v958
    %v960 = vpop.f32.mrb[0].mxu0
    %v961 = vpop.f32.mrb[0].mxu0
    %962 = vdwg.mxu0
    %963 = vmatprep.subr.bf16.mxu0 %v681
    %964 = vmatpush1.bf16.msra.mxu0 %v680
    %965 = vmatprep.subr.bf16.mxu0 %v683
    %966 = vmatpush1.bf16.msra.mxu0 %v682
    %967 = vmatprep.subr.bf16.mxu0 %v685
    %968 = vmatpush1.bf16.msra.mxu0 %v684
    %969 = vmatprep.subr.bf16.mxu0 %v687
    %970 = vmatpush1.bf16.msra.mxu0 %v686
    %971 = vmatprep.subr.bf16.mxu0 %v689
    %972 = vmatpush1.bf16.msra.mxu0 %v688
    %973 = vmatprep.subr.bf16.mxu0 %v691
    %974 = vmatpush1.bf16.msra.mxu0 %v690
    %975 = vmatprep.subr.bf16.mxu0 %v693
    %976 = vmatpush1.bf16.msra.mxu0 %v692
    %977 = vmatprep.subr.bf16.mxu0 %v695
    %978 = vmatpush1.bf16.msra.mxu0 %v694
    %979 = vmatprep.subr.bf16.mxu0 %v697
    %980 = vmatpush1.bf16.msra.mxu0 %v696
    %981 = vmatprep.subr.bf16.mxu0 %v699
    %982 = vmatpush1.bf16.msra.mxu0 %v698
    %983 = vmatprep.subr.bf16.mxu0 %v701
    %984 = vmatpush1.bf16.msra.mxu0 %v700
    %985 = vmatprep.subr.bf16.mxu0 %v703
    %986 = vmatpush1.bf16.msra.mxu0 %v702
    %987 = vmatprep.subr.bf16.mxu0 %v705
    %988 = vmatpush1.bf16.msra.mxu0 %v704
    %989 = vmatprep.subr.bf16.mxu0 %v707
    %990 = vmatpush1.bf16.msra.mxu0 %v706
    %991 = vmatprep.subr.bf16.mxu0 %v709
    %992 = vmatpush1.bf16.msra.mxu0 %v708
    %993 = vmatprep.subr.bf16.mxu0 %v711
    %994 = vmatpush1.bf16.msra.mxu0 %v710
    %995 = vmatprep.mubr.bf16.mxu0 %v191
    %996 = vmatmul.mubr.bf16.gmra.mrb[0].mxu0 %v190
    %v997 = vpop.f32.mrb[0].mxu0
    %v998 = vadd.f32 %v957, %v997
    %v999 = vpop.f32.mrb[0].mxu0
    %v1000 = vadd.f32 %v959, %v999
    %v1001 = vpop.f32.mrb[0].mxu0
    %v1002 = vpop.f32.mrb[0].mxu0
    %1003 = vdwg.mxu0
    %1004 = vst [vmem:[%s3] sm:$0xff] %v998
    %1005 = vst [vmem:[%s3 + $0x8] sm:$0xff] %v1000
    // Predicated region
    $region18: #{pallas_linear.1} parent=1 // pred_check
      _
    $region19: #{pallas_linear.1} parent=1 // pred_check_branch
      %1007 = sbr.rel (0) target = $region21
    $region20: #{pallas_linear.1} parent=1 // pred_region
      _
    $region21: #{pallas_linear.1} parent=1 // pred_fallthru
      _
    // Predicated region
    $region22: #{pallas_linear.1} parent=1 // pred_check
      _
    $region23: #{pallas_linear.1} parent=1 // pred_check_branch
      %1009 = sbr.rel (0) target = $region25
    $region24: #{pallas_linear.1} parent=1 // pred_region
      _
    $region25: #{pallas_linear.1} parent=1 // pred_fallthru
      _
    %1010 = vsyncpa [#allocation3], 1

</llo_original>
